<compile_context>
chip_gen: v6e
topology: v6e:2x2x1
jax: 0.10.0
libtpu: 0.0.40
codegen_flags: <defaults>
</compile_context>

<pallas_src>
import math

import jax
import jax.numpy as jnp
from jax.experimental import pallas as pl
from jax.experimental.pallas import tpu as pltpu


def _row_splits(n_rows: int, max_slices: int = 4):
    """Split [0, n_rows) into <= max_slices contiguous, static row chunks."""
    k = max(1, min(max_slices, n_rows))
    base, rem = divmod(n_rows, k)
    splits, start = [], 0
    for i in range(k):
        size = base + (1 if i < rem else 0)
        if size > 0:
            splits.append((start, size))
            start += size
    return splits


def _make_hbm_copy_kernel(row_splits):
    """Build a kernel doing a direct HBM->HBM DMA copy of a 2D array.

    The copy is split into static contiguous row slices, each driven by its
    own DMA semaphore so independent DMA queues can overlap.
    """
    n_slices = len(row_splits)

    def kernel(x_hbm, o_hbm):
        def body(sems):
            copies = []
            for i, (start, size) in enumerate(row_splits):
                cp = pltpu.make_async_copy(
                    x_hbm.at[pl.ds(start, size)],
                    o_hbm.at[pl.ds(start, size)],
                    sems.at[i],
                )
                cp.start()
                copies.append(cp)
            for cp in copies:
                cp.wait()

        pl.run_scoped(body, pltpu.SemaphoreType.DMA((n_slices,)))

    return kernel


def flatten(feat: jax.Array, materialize: bool = False) -> jax.Array:
    """Pallas equivalent of Flatten.forward: (N, C, H, W, ...) -> (N, prod).

    materialize=False (default): metadata-only reshape, no kernel launch.
    materialize=True: produce a fresh HBM buffer via a direct HBM->HBM DMA
    copy kernel (useful when the caller explicitly needs a materialized copy).
    """
    n = feat.shape[0]
    flat = math.prod(feat.shape[1:]) if len(feat.shape) > 1 else 1

    # Metadata-only flatten (free on contiguous inputs).
    x2 = feat.reshape(n, flat)

    if not materialize or n == 0 or flat == 0:
        return x2

    row_splits = _row_splits(n, max_slices=4)
    kernel = _make_hbm_copy_kernel(row_splits)

    return pl.pallas_call(
        kernel,
        out_shape=jax.ShapeDtypeStruct((n, flat), feat.dtype),
        in_specs=[pl.BlockSpec(memory_space=pl.ANY)],
        out_specs=pl.BlockSpec(memory_space=pl.ANY),
    )(x2)


if __name__ == "__main__":
    key = jax.random.PRNGKey(0)
    # small shapes consistent with a conv feature map: N=2, C=4, H=W=16
    x = jax.random.normal(key, (2, 4, 16, 16), dtype=jnp.float32)

    ref = x.reshape(x.shape[0], -1)

    # Fast path (what callers should normally use): metadata-only reshape.
    y_fast = flatten(x)
    jax.block_until_ready(y_fast)
    assert y_fast.shape == (2, 4 * 16 * 16), y_fast.shape
    assert jnp.array_equal(y_fast, ref), "fast path mismatch vs reference"

    # Materialized Pallas path: explicit HBM->HBM DMA copy kernel.
    y = flatten(x, materialize=True)
    jax.block_until_ready(y)
    assert y.shape == (2, 4 * 16 * 16), y.shape
    assert y.dtype == x.dtype
    assert jnp.array_equal(y, ref), "kernel mismatch vs reference reshape"

    print("KERNEL_OK")
</pallas_src>

<mosaic_0001>
module attributes {stable_mosaic.version = 11 : i64} {
  func.func @kernel(%arg0: memref<2x1024xf32, #tpu.memory_space<any>>, %arg1: memref<2x1024xf32, #tpu.memory_space<any>>) attributes {dimension_semantics = [], scalar_prefetch = 0 : i64, scratch_operands = 0 : i64, tpu.core_type = #tpu.core_type<tc>} {
    "tpu.region"() ({
      %0 = tpu.sem_alloc : memref<2x!tpu.dma_semaphore, #tpu.memory_space<semaphore_mem>>
      %c0_i32 = arith.constant 0 : i32
      %c0_i32_0 = arith.constant 0 : i32
      %c0_i32_1 = arith.constant 0 : i32
      %1 = tpu.memref_slice %arg0[%c0_i32_0, %c0_i32_1] : memref<2x1024xf32, #tpu.memory_space<any>> -> memref<1x1024xf32, #tpu.memory_space<any>>
      %c0_i32_2 = arith.constant 0 : i32
      %c0_i32_3 = arith.constant 0 : i32
      %2 = tpu.memref_slice %arg1[%c0_i32_2, %c0_i32_3] : memref<2x1024xf32, #tpu.memory_space<any>> -> memref<1x1024xf32, #tpu.memory_space<any>>
      %3 = tpu.memref_slice %0[%c0_i32] : memref<2x!tpu.dma_semaphore, #tpu.memory_space<semaphore_mem>> -> memref<1x!tpu.dma_semaphore, #tpu.memory_space<semaphore_mem>>
      %4 = tpu.memref_squeeze %3 : memref<1x!tpu.dma_semaphore, #tpu.memory_space<semaphore_mem>> -> memref<!tpu.dma_semaphore, #tpu.memory_space<semaphore_mem>>
      tpu.enqueue_dma source(%1 : memref<1x1024xf32, #tpu.memory_space<any>>) target(%2 : memref<1x1024xf32, #tpu.memory_space<any>>) target_semaphore(%4 : memref<!tpu.dma_semaphore, #tpu.memory_space<semaphore_mem>>)
      %c1_i32 = arith.constant 1 : i32
      %c1_i32_4 = arith.constant 1 : i32
      %c0_i32_5 = arith.constant 0 : i32
      %5 = tpu.memref_slice %arg0[%c1_i32_4, %c0_i32_5] : memref<2x1024xf32, #tpu.memory_space<any>> -> memref<1x1024xf32, #tpu.memory_space<any>>
      %c1_i32_6 = arith.constant 1 : i32
      %c0_i32_7 = arith.constant 0 : i32
      %6 = tpu.memref_slice %arg1[%c1_i32_6, %c0_i32_7] : memref<2x1024xf32, #tpu.memory_space<any>> -> memref<1x1024xf32, #tpu.memory_space<any>>
      %7 = tpu.memref_slice %0[%c1_i32] : memref<2x!tpu.dma_semaphore, #tpu.memory_space<semaphore_mem>> -> memref<1x!tpu.dma_semaphore, #tpu.memory_space<semaphore_mem>>
      %8 = tpu.memref_squeeze %7 : memref<1x!tpu.dma_semaphore, #tpu.memory_space<semaphore_mem>> -> memref<!tpu.dma_semaphore, #tpu.memory_space<semaphore_mem>>
      tpu.enqueue_dma source(%5 : memref<1x1024xf32, #tpu.memory_space<any>>) target(%6 : memref<1x1024xf32, #tpu.memory_space<any>>) target_semaphore(%8 : memref<!tpu.dma_semaphore, #tpu.memory_space<semaphore_mem>>)
      %c0_i32_8 = arith.constant 0 : i32
      %c0_i32_9 = arith.constant 0 : i32
      %c0_i32_10 = arith.constant 0 : i32
      %9 = tpu.memref_slice %arg0[%c0_i32_9, %c0_i32_10] : memref<2x1024xf32, #tpu.memory_space<any>> -> memref<1x1024xf32, #tpu.memory_space<any>>
      %c0_i32_11 = arith.constant 0 : i32
      %c0_i32_12 = arith.constant 0 : i32
      %10 = tpu.memref_slice %arg1[%c0_i32_11, %c0_i32_12] : memref<2x1024xf32, #tpu.memory_space<any>> -> memref<1x1024xf32, #tpu.memory_space<any>>
      %11 = tpu.memref_slice %0[%c0_i32_8] : memref<2x!tpu.dma_semaphore, #tpu.memory_space<semaphore_mem>> -> memref<1x!tpu.dma_semaphore, #tpu.memory_space<semaphore_mem>>
      %12 = tpu.memref_squeeze %11 : memref<1x!tpu.dma_semaphore, #tpu.memory_space<semaphore_mem>> -> memref<!tpu.dma_semaphore, #tpu.memory_space<semaphore_mem>>
      tpu.wait_dma2 semaphore(%12 : memref<!tpu.dma_semaphore, #tpu.memory_space<semaphore_mem>>) src(%9 : memref<1x1024xf32, #tpu.memory_space<any>>) dst(%10 : memref<1x1024xf32, #tpu.memory_space<any>>)
      %c1_i32_13 = arith.constant 1 : i32
      %c1_i32_14 = arith.constant 1 : i32
      %c0_i32_15 = arith.constant 0 : i32
      %13 = tpu.memref_slice %arg0[%c1_i32_14, %c0_i32_15] : memref<2x1024xf32, #tpu.memory_space<any>> -> memref<1x1024xf32, #tpu.memory_space<any>>
      %c1_i32_16 = arith.constant 1 : i32
      %c0_i32_17 = arith.constant 0 : i32
      %14 = tpu.memref_slice %arg1[%c1_i32_16, %c0_i32_17] : memref<2x1024xf32, #tpu.memory_space<any>> -> memref<1x1024xf32, #tpu.memory_space<any>>
      %15 = tpu.memref_slice %0[%c1_i32_13] : memref<2x!tpu.dma_semaphore, #tpu.memory_space<semaphore_mem>> -> memref<1x!tpu.dma_semaphore, #tpu.memory_space<semaphore_mem>>
      %16 = tpu.memref_squeeze %15 : memref<1x!tpu.dma_semaphore, #tpu.memory_space<semaphore_mem>> -> memref<!tpu.dma_semaphore, #tpu.memory_space<semaphore_mem>>
      tpu.wait_dma2 semaphore(%16 : memref<!tpu.dma_semaphore, #tpu.memory_space<semaphore_mem>>) src(%13 : memref<1x1024xf32, #tpu.memory_space<any>>) dst(%14 : memref<1x1024xf32, #tpu.memory_space<any>>)
      tpu.yield
    }) : () -> ()
    return
  }
}

</mosaic_0001>

<llo_original>
// kernel: tpu_custom_call.1
$region0: #{tpu_custom_call.1}
  #allocation0 [shape = 'u32[]', space=smem, size = 0x4, offset = 0x4, fixed_abs, tag = 'smem constant byte address 0x4 - core index']
  #allocation1 [shape = 'u32[144,128]{1,0:T(1,128)}', space=vmem, size = 0x12000, scoped, tag = 'internal scratch']
  #allocation3 [shape = 's32[]', space=sflag, size = 0x4, offset = 0, fixed_abs, tag = 'sflag constant byte address 0x0 - dummy sync flag']
  #allocation5 [shape = 's32[]', space=sflag, size = 0x4, offset = 0, fixed_abs, tag = 'sflag constant byte address 0x0 - dummy sync flag']
  %s0 = inlined_call_operand.hbm [shape: f32[2,1024], index: 0, kind: input, shape index: {}]
  %s1 = inlined_call_operand.hbm [shape: f32[2,1024], index: 1, kind: output, shape index: {}]
  %s2 = sld [smem:[#allocation0]]
  $region3: #{tpu_custom_call.1} parent=0
    _
  %s4 = ssub.s32 1, %s2
  %s5 = scalar_select 0, %s4, %s2
  $region2: #{tpu_custom_call.1} parent=0
    #allocation2 [shape = 's32[2]{0}', space=sflag, size = 0x8, scoped, tag = 'scoped memory for tpu_custom_call.1']
    #allocation4 [shape = 'u32[3]{0}', space=smem, size = 0xc, scoped, tag = 'DMA stride descriptor']
    #allocation6 [shape = 'u32[3]{0}', space=smem, size = 0xc, scoped, tag = 'DMA stride descriptor']
    %s7 = sshll.u32 1, 14
    %s8 = sxor.u32 4294967295, %s7
    %12 = sst [smem:[#allocation4]] 32
    %s13 = scalar_lea.smem [#allocation4], 1
    %14 = sst [smem:[%s13]] 32
    %s15 = scalar_lea.smem [#allocation4], 2
    %16 = sst [smem:[%s15]] 1
    %18 = dma.general %s0, 128, %s1, [#allocation2], 131072, [#allocation4], 0, 0
    %s19 = scalar_lea.hbm %s0, 16
    %s20 = scalar_lea.hbm %s1, 16
    %s21 = scalar_lea.sflag [#allocation2], 1
    %s23 = sshll.u32 1, 14
    %s24 = sxor.u32 4294967295, %s23
    %28 = sst [smem:[#allocation6]] 32
    %s29 = scalar_lea.smem [#allocation6], 1
    %30 = sst [smem:[%s29]] 32
    %s31 = scalar_lea.smem [#allocation6], 2
    %32 = sst [smem:[%s31]] 1
    %34 = dma.general %s19, 128, %s20, %s21, 131072, [#allocation6], 0, 0
    %s35 = smul.u32 1, 8
    %s36 = sshll.u32 %s35, 4
    %37 = dma.done [#allocation2], %s36
    %s38 = sshll.u32 %s35, 4
    %39 = dma.done %s21, %s38

</llo_original>
